<compile_context>
chip_gen: v7x
topology: tpu7x:2x2x1
jax: 0.10.0
libtpu: 0.0.40
codegen_flags: <defaults>
</compile_context>

<pallas_src>
import functools

import jax
import jax.numpy as jnp
from jax import lax
from jax.experimental import pallas as pl
from jax.experimental.pallas import tpu as pltpu

SUBLANES = 8
LANES = 128
INNER_ROWS = 128                 # rows folded per fori_loop step (16 f32 vregs)
INNER_UNROLL = 8                 # partial unroll of the inner reduction loop


def _round_up(a, b):
    return (a + b - 1) // b * b


@functools.lru_cache(maxsize=1)
def _chip_profile():
    """(num_core_splits, target_tile_bytes) for the local TPU generation."""
    kind = ""
    try:
        kind = jax.devices()[0].device_kind.lower()
    except Exception:
        pass
    if "7" in kind:                    # v7x: 2 TCs, ~3.2 TB/s HBM, 64 MiB VMEM
        return 2, 8 << 20
    if "v6" in kind or "6e" in kind:   # v6e: 1 TC, ~1.4 TB/s HBM
        return 1, 8 << 20
    if "v5p" in kind or "v4" in kind:  # megacore: 2 TCs behind one device
        return 2, 8 << 20
    # v5e / older / unknown: 1 TC; 4 MiB tile already has <8% step overhead.
    return 1, 4 << 20


def _sublane_multiple(itemsize):
    # Packed sub-32-bit dtypes need (16,128)/(32,128) minimum tiles.
    return {4: SUBLANES, 2: 2 * SUBLANES, 1: 4 * SUBLANES}.get(itemsize, SUBLANES)


def _pick_tile_rows(rows, itemsize, target_bytes):
    """Tile rows: multiple of the packed sublane count (and of INNER_ROWS when
    large), sized for ~target_bytes per tile."""
    mult = _sublane_multiple(itemsize)
    rows_min = _round_up(max(rows, 1), mult)
    if rows_min <= INNER_ROWS:
        return rows_min                               # single small tile
    tile = (target_bytes // (LANES * itemsize)) // INNER_ROWS * INNER_ROWS
    tile = max(INNER_ROWS, tile)
    return min(tile, _round_up(rows_min, INNER_ROWS))


def _one_sided_kernel(x_ref, o_ref, acc_ref, *, rows, tile_rows, inner_rows,
                      blocks_per_core):
    c = pl.program_id(0)                 # core-split index (parallel)
    i = pl.program_id(1)                 # reduction step   (arbitrary)

    @pl.when(i == 0)
    def _():
        acc_ref[...] = jnp.zeros_like(acc_ref)

    block_idx = c * blocks_per_core + i
    valid = rows - block_idx * tile_rows  # real rows in this tile (may be <= 0)
    n_inner = tile_rows // inner_rows
    unroll = max(1, min(INNER_UNROLL, n_inner))

    def fold(masked):
        row_iota = (lax.broadcasted_iota(jnp.int32, (inner_rows, LANES), 0)
                    if masked else None)

        def body(s, acc):
            r0 = pl.multiple_of(s * inner_rows, inner_rows)
            blk = x_ref[pl.ds(r0, inner_rows), :].astype(jnp.float32)
            vals = jnp.minimum(blk, 0.0)             # min(x,0) == -relu(-x)
            if masked:
                vals = jnp.where((row_iota + r0) < valid, vals, 0.0)
            return acc + vals.reshape(-1, SUBLANES, LANES).sum(axis=0)

        init = jnp.zeros((SUBLANES, LANES), jnp.float32)
        try:    # partial unroll: co-issue vld with the min/add VALU work
            return lax.fori_loop(0, n_inner, body, init, unroll=unroll)
        except TypeError:                # older fori_loop without unroll=
            return lax.fori_loop(0, n_inner, body, init)

    @pl.when(valid >= tile_rows)          # hot path: fully valid tile, no mask
    def _():
        acc_ref[...] += fold(False)

    @pl.when(jnp.logical_and(valid > 0, valid < tile_rows))   # ragged last tile
    def _():
        acc_ref[...] += fold(True)

    @pl.when(i == pl.num_programs(1) - 1)  # full-width unmasked (8,128) store
    def _():
        o_ref[0] = acc_ref[...]


def one_sided(x, tile_bytes=None):
    """Pallas equivalent of ONE_SIDED.forward: returns a scalar f32."""
    x_flat = x.reshape(-1)
    n = x_flat.size
    itemsize = jnp.dtype(x_flat.dtype).itemsize

    n_main = (n // LANES) * LANES
    tail = n - n_main

    tail_sum = jnp.zeros((), jnp.float32)
    if tail:                              # < 128 stragglers: sum in the wrapper
        tail_sum = jnp.sum(jnp.minimum(x_flat[n_main:].astype(jnp.float32), 0.0))
    if n_main == 0:
        return tail_sum / n

    rows = n_main // LANES
    # Copy-free reshape when n % 128 == 0 (the common case).
    # TODO(synk): for ragged n this prefix slice costs one extra HBM pass; a
    # manual-DMA (memory_space=pl.ANY) flat-chunk path would remove it.
    x2 = (x_flat if not tail else x_flat[:n_main]).reshape(rows, LANES)

    num_splits, target_tile_bytes = _chip_profile()
    if tile_bytes is not None:            # testing / tuning override
        target_tile_bytes = int(tile_bytes)

    tile_rows = _pick_tile_rows(rows, itemsize, target_tile_bytes)
    inner_rows = min(INNER_ROWS, tile_rows)
    total_blocks = pl.cdiv(rows, tile_rows)
    num_splits = max(1, min(num_splits, total_blocks))   # no split on 1 block
    blocks_per_core = pl.cdiv(total_blocks, num_splits)
    last_block = total_blocks - 1

    in_index_map = lambda c, i: (
        # Clamp so an odd block count never indexes past the array; the
        # duplicated tile contributes nothing (valid <= 0 in the kernel).
        jnp.minimum(c * blocks_per_core + i, last_block), 0)

    num_buffers = 2
    in_spec = pl.BlockSpec((tile_rows, LANES), in_index_map)
    if blocks_per_core >= 3:
        try:    # triple-buffer the input so two DMAs stay in flight
            in_spec = pl.BlockSpec((tile_rows, LANES), in_index_map,
                                   pipeline_mode=pl.Buffered(3))
            num_buffers = 3
        except TypeError:                 # BlockSpec without pipeline_mode
            pass

    # Explicit VMEM budget for the pipelined input buffers (+ slack) instead
    # of relying on the per-generation scoped default.
    in_tile_bytes = tile_rows * LANES * itemsize
    vmem_limit = int(min(max(num_buffers * in_tile_bytes + (2 << 20), 16 << 20),
                         48 << 20))

    kernel = functools.partial(
        _one_sided_kernel, rows=rows, tile_rows=tile_rows,
        inner_rows=inner_rows, blocks_per_core=blocks_per_core)

    cost = pl.CostEstimate(
        flops=2 * n_main, transcendentals=0,
        bytes_accessed=n_main * itemsize + num_splits * SUBLANES * LANES * 4)

    # TODO(synk): on v7x, confirm via xprof that the leading "parallel" axis
    # actually lands on both TensorCores; if one TC idles, switch it to
    # pltpu.CORE_PARALLEL / pl.core_map.
    partials = pl.pallas_call(
        kernel,
        out_shape=jax.ShapeDtypeStruct((num_splits, SUBLANES, LANES),
                                       jnp.float32),
        grid=(num_splits, blocks_per_core),
        in_specs=[in_spec],
        out_specs=pl.BlockSpec((1, SUBLANES, LANES), lambda c, i: (c, 0, 0)),
        scratch_shapes=[pltpu.VMEM((SUBLANES, LANES), jnp.float32)],
        compiler_params=pltpu.CompilerParams(
            dimension_semantics=("parallel", "arbitrary"),
            vmem_limit_bytes=vmem_limit),
        cost_estimate=cost,
    )(x2)

    # Tiny epilogue: num_splits*8*128 partials + tail, / the ORIGINAL count.
    return (jnp.sum(partials) + tail_sum) / n


def one_sided_ref(x):
    """Pure-JAX reference matching the PyTorch module."""
    return -jnp.mean(jnp.maximum(-x.astype(jnp.float32), 0.0))


if __name__ == "__main__":
    key = jax.random.PRNGKey(0)
    k1, k2, k3 = jax.random.split(key, 3)

    # 1) Small NCHW input consistent with the module's usage (n % 128 == 0).
    x1 = jax.random.normal(k1, (2, 4, 16, 16), dtype=jnp.float32)
    out1 = jax.block_until_ready(jax.jit(one_sided)(x1))
    ref1 = jax.block_until_ready(one_sided_ref(x1))
    assert jnp.allclose(out1, ref1, atol=1e-6, rtol=1e-6), (out1, ref1)

    # 2) Ragged bf16 input: exercises packed-sublane tile, masked rows, tail.
    x2 = jax.random.normal(k2, (2, 3, 8, 20), dtype=jnp.bfloat16)
    out2 = jax.block_until_ready(jax.jit(one_sided)(x2))
    ref2 = jax.block_until_ready(one_sided_ref(x2))
    assert jnp.allclose(out2, ref2, atol=1e-5, rtol=1e-5), (out2, ref2)

    # 3) Multi-block path with a small forced tile: exercises the pipelined
    #    accumulation (and triple buffering) without needing a huge input.
    x3 = jax.random.normal(k3, (1, 7, 100, 128), dtype=jnp.float32)
    small_tile_fn = jax.jit(functools.partial(one_sided, tile_bytes=64 * 1024))
    out3 = jax.block_until_ready(small_tile_fn(x3))
    ref3 = jax.block_until_ready(one_sided_ref(x3))
    assert jnp.allclose(out3, ref3, atol=1e-6, rtol=1e-5), (out3, ref3)

    print("KERNEL_OK")
</pallas_src>

<mosaic_0001>
module attributes {stable_mosaic.version = 11 : i64} {
  func.func @_one_sided_kernel(%arg0: i32, %arg1: i32, %arg2: memref<16x128xf32, #tpu.memory_space<vmem>>, %arg3: memref<1x8x128xf32, #tpu.memory_space<vmem>>, %arg4: memref<8x128xf32, #tpu.memory_space<vmem>>) attributes {dimension_semantics = [#tpu.dimension_semantics<parallel>, #tpu.dimension_semantics<arbitrary>], iteration_bounds = array<i64: 1, 1>, scalar_prefetch = 0 : i64, scratch_operands = 1 : i64, tpu.core_type = #tpu.core_type<tc>, window_params = [{transform_indices = @transform_0, window_bounds = array<i64: 16, 128>}, {transform_indices = @transform_1, window_bounds = array<i64: 1, 8, 128>}]} {
    %c0_i32 = arith.constant 0 : i32
    %0 = arith.cmpi eq, %arg1, %c0_i32 : i32
    %1 = arith.extui %0 : i1 to i32
    %c0_i32_0 = arith.constant 0 : i32
    %2 = arith.cmpi ne, %1, %c0_i32_0 : i32
    scf.if %2 {
      %cst = arith.constant 0.000000e+00 : f32
      %18 = vector.broadcast %cst : f32 to vector<8x128xf32>
      %c0 = arith.constant 0 : index
      %c0_9 = arith.constant 0 : index
      %19 = vector.load %arg4[%c0, %c0_9] : memref<8x128xf32, #tpu.memory_space<vmem>>, vector<8x128xf32>
      tpu.vector_store %arg4[%c0, %c0_9], %18 {strides = array<i32>} : memref<8x128xf32, #tpu.memory_space<vmem>>, vector<8x128xf32>,
    } else {
    }
    %c1_i32 = arith.constant 1 : i32
    %3 = arith.muli %arg0, %c1_i32 : i32
    %4 = arith.addi %3, %arg1 : i32
    %c16_i32 = arith.constant 16 : i32
    %5 = arith.muli %4, %c16_i32 : i32
    %c16_i32_1 = arith.constant 16 : i32
    %6 = arith.subi %c16_i32_1, %5 : i32
    %c16_i32_2 = arith.constant 16 : i32
    %7 = arith.cmpi sge, %6, %c16_i32_2 : i32
    %8 = arith.extui %7 : i1 to i32
    %c0_i32_3 = arith.constant 0 : i32
    %9 = arith.cmpi ne, %8, %c0_i32_3 : i32
    scf.if %9 {
      %c0 = arith.constant 0 : index
      %c0_9 = arith.constant 0 : index
      %18 = vector.load %arg4[%c0, %c0_9] : memref<8x128xf32, #tpu.memory_space<vmem>>, vector<8x128xf32>
      %cst = arith.constant 0.000000e+00 : f32
      %19 = vector.broadcast %cst : f32 to vector<8x128xf32>
      %c0_i32_10 = arith.constant 0 : i32
      %c16_i32_11 = arith.constant 16 : i32
      %20 = arith.muli %c0_i32_10, %c16_i32_11 : i32
      %21 = tpu.assume_multiple %20, 16 : i32
      %22 = arith.index_cast %21 : i32 to index
      %c0_12 = arith.constant 0 : index
      %23 = vector.load %arg2[%22, %c0_12] : memref<16x128xf32, #tpu.memory_space<vmem>>, vector<16x128xf32>
      %cst_13 = arith.constant 0.000000e+00 : f32
      %24 = vector.broadcast %cst_13 : f32 to vector<16x128xf32>
      %25 = arith.minimumf %23, %24 : vector<16x128xf32>
      %26 = vector.shape_cast %25 : vector<16x128xf32> to vector<2x8x128xf32>
      %cst_14 = arith.constant dense<0.000000e+00> : vector<8x128xf32>
      %27 = vector.multi_reduction <add>, %26, %cst_14 [0] : vector<2x8x128xf32> to vector<8x128xf32>
      %28 = arith.addf %19, %27 : vector<8x128xf32>
      %c1_i32_15 = arith.constant 1 : i32
      %29 = arith.addf %18, %28 : vector<8x128xf32>
      %c0_16 = arith.constant 0 : index
      %c0_17 = arith.constant 0 : index
      %30 = vector.load %arg4[%c0_16, %c0_17] : memref<8x128xf32, #tpu.memory_space<vmem>>, vector<8x128xf32>
      tpu.vector_store %arg4[%c0_16, %c0_17], %29 {strides = array<i32>} : memref<8x128xf32, #tpu.memory_space<vmem>>, vector<8x128xf32>,
    } else {
    }
    %c0_i32_4 = arith.constant 0 : i32
    %10 = arith.cmpi sgt, %6, %c0_i32_4 : i32
    %c16_i32_5 = arith.constant 16 : i32
    %11 = arith.cmpi slt, %6, %c16_i32_5 : i32
    %12 = arith.andi %10, %11 : i1
    %13 = arith.extui %12 : i1 to i32
    %c0_i32_6 = arith.constant 0 : i32
    %14 = arith.cmpi ne, %13, %c0_i32_6 : i32
    scf.if %14 {
      %c0 = arith.constant 0 : index
      %c0_9 = arith.constant 0 : index
      %18 = vector.load %arg4[%c0, %c0_9] : memref<8x128xf32, #tpu.memory_space<vmem>>, vector<8x128xf32>
      %19 = tpu.iota {dimensions = array<i32: 0>} : vector<16x128xi32>
      %cst = arith.constant 0.000000e+00 : f32
      %20 = vector.broadcast %cst : f32 to vector<8x128xf32>
      %c0_i32_10 = arith.constant 0 : i32
      %c16_i32_11 = arith.constant 16 : i32
      %21 = arith.muli %c0_i32_10, %c16_i32_11 : i32
      %22 = tpu.assume_multiple %21, 16 : i32
      %23 = arith.index_cast %22 : i32 to index
      %c0_12 = arith.constant 0 : index
      %24 = vector.load %arg2[%23, %c0_12] : memref<16x128xf32, #tpu.memory_space<vmem>>, vector<16x128xf32>
      %cst_13 = arith.constant 0.000000e+00 : f32
      %25 = vector.broadcast %cst_13 : f32 to vector<16x128xf32>
      %26 = arith.minimumf %24, %25 : vector<16x128xf32>
      %27 = vector.broadcast %22 : i32 to vector<16x128xi32>
      %28 = arith.addi %19, %27 : vector<16x128xi32>
      %29 = vector.broadcast %6 : i32 to vector<16x128xi32>
      %30 = arith.cmpi slt, %28, %29 : vector<16x128xi32>
      %cst_14 = arith.constant 0.000000e+00 : f32
      %31 = vector.broadcast %cst_14 : f32 to vector<16x128xf32>
      %32 = arith.select %30, %26, %31 : vector<16x128xi1>, vector<16x128xf32>
      %33 = vector.shape_cast %32 : vector<16x128xf32> to vector<2x8x128xf32>
      %cst_15 = arith.constant dense<0.000000e+00> : vector<8x128xf32>
      %34 = vector.multi_reduction <add>, %33, %cst_15 [0] : vector<2x8x128xf32> to vector<8x128xf32>
      %35 = arith.addf %20, %34 : vector<8x128xf32>
      %c1_i32_16 = arith.constant 1 : i32
      %36 = arith.addf %18, %35 : vector<8x128xf32>
      %c0_17 = arith.constant 0 : index
      %c0_18 = arith.constant 0 : index
      %37 = vector.load %arg4[%c0_17, %c0_18] : memref<8x128xf32, #tpu.memory_space<vmem>>, vector<8x128xf32>
      tpu.vector_store %arg4[%c0_17, %c0_18], %36 {strides = array<i32>} : memref<8x128xf32, #tpu.memory_space<vmem>>, vector<8x128xf32>,
    } else {
    }
    %c0_i32_7 = arith.constant 0 : i32
    %15 = arith.cmpi eq, %arg1, %c0_i32_7 : i32
    %16 = arith.extui %15 : i1 to i32
    %c0_i32_8 = arith.constant 0 : i32
    %17 = arith.cmpi ne, %16, %c0_i32_8 : i32
    scf.if %17 {
      %c0 = arith.constant 0 : index
      %c0_9 = arith.constant 0 : index
      %18 = vector.load %arg4[%c0, %c0_9] : memref<8x128xf32, #tpu.memory_space<vmem>>, vector<8x128xf32>
      %c0_10 = arith.constant 0 : index
      %c0_11 = arith.constant 0 : index
      %c0_12 = arith.constant 0 : index
      %19 = vector.load %arg3[%c0_10, %c0_11, %c0_12] : memref<1x8x128xf32, #tpu.memory_space<vmem>>, vector<1x8x128xf32>
      %20 = vector.shape_cast %19 : vector<1x8x128xf32> to vector<8x128xf32>
      %21 = vector.shape_cast %18 : vector<8x128xf32> to vector<1x8x128xf32>
      tpu.vector_store %arg3[%c0_10, %c0_11, %c0_12], %21 {strides = array<i32>} : memref<1x8x128xf32, #tpu.memory_space<vmem>>, vector<1x8x128xf32>,
    } else {
    }
    return
  }
  func.func @transform_0(%arg0: i32, %arg1: i32) -> (i32, i32) {
    %c1_i32 = arith.constant 1 : i32
    %0 = arith.muli %arg0, %c1_i32 : i32
    %1 = arith.addi %0, %arg1 : i32
    %c0_i32 = arith.constant 0 : i32
    %2 = arith.minsi %1, %c0_i32 : i32
    %c0_i32_0 = arith.constant 0 : i32
    %c0_i32_1 = arith.constant 0 : i32
    return %2, %c0_i32_0 : i32, i32
  }
  func.func @transform_1(%arg0: i32, %arg1: i32) -> (i32, i32, i32) {
    %c0_i32 = arith.constant 0 : i32
    %c0_i32_0 = arith.constant 0 : i32
    %c0_i32_1 = arith.constant 0 : i32
    return %arg0, %c0_i32, %c0_i32_0 : i32, i32, i32
  }
}

</mosaic_0001>

<llo_original>
// kernel: one_sided.1
$region0: #{one_sided.1}
  #allocation0 [shape = 'u32[]', space=smem, size = 0x4, offset = 0x4, fixed_abs, tag = 'smem constant byte address 0x4 - core index']
  #allocation1 [shape = 'u32[144,128]{1,0:T(1,128)}', space=vmem, size = 0x12000, scoped, tag = 'internal scratch']
  #allocation2 [shape = 'f32[8,128]{1,0:T(8,128)}', space=vmem, size = 0x1000, scoped, tag = 'scratch operand']
  %s0 = inlined_call_operand.vmem [shape: f32[16,128], index: 0, kind: input, shape index: {}]
  %s1 = inlined_call_operand.vmem [shape: f32[1,8,128], index: 1, kind: output, shape index: {}]
  %s2 = sld [smem:[#allocation0]]
  $region30: #{one_sided.1} parent=0
    _
  %s4 = ssub.s32 1, %s2
  %s5 = scalar_select 0, %s4, %s2
  // Predicated region
  $region2: #{one_sided.1} parent=0 // pred_check
    _
  $region3: #{one_sided.1} parent=0 // pred_check_branch
    %7 = sbr.rel (0) target = $region5
  $region4: #{one_sided.1} parent=0 // pred_region
    %s8 = sadd.s32 0, 0
    %p9 = scmp.lt.s32.totalorder %s8, 0
    %s10 = scalar_select %p9, %s8, 0
    %s11 = smul.u32 2, %s10
    %p12 = scmp.lt.s32.totalorder %s11, 1
    %s13 = scalar_select %p12, %s11, 1
    %s14 = smul.addr %s13, 8
    %s15 = scalar_lea.vmem %s0, %s14
    %s16 = sadd.s32 0, 0
    %p17 = scmp.lt.s32.totalorder %s16, 0
    %s18 = scalar_select %p17, %s16, 0
    %s19 = smul.u32 2, %s18
  $region5: #{one_sided.1} parent=0 // pred_fallthru
    _
  %s20 = sadd.s32 0, 0
  %p21 = scmp.lt.s32.totalorder %s20, 0
  %s22 = scalar_select %p21, %s20, 0
  %s23 = smul.u32 2, %s22
  %p24 = scmp.lt.s32.totalorder %s23, 1
  %s25 = scalar_select %p24, %s23, 1
  %s26 = smul.addr %s25, 8
  %s27 = scalar_lea.vmem %s0, %s26
  %s28 = sadd.s32 0, 0
  %p29 = scmp.lt.s32.totalorder %s28, 0
  %s30 = scalar_select %p29, %s28, 0
  %s31 = smul.u32 2, %s30
  %p32 = scmp.lt.s32.totalorder %s31, 1
  %s33 = scalar_select %p32, %s31, 1
  %s34 = smul.addr %s33, 8
  %s35 = scalar_lea.vmem %s0, %s34
  %s36 = sadd.s32 0, 0
  %p37 = scmp.lt.s32.totalorder %s36, 0
  %s38 = scalar_select %p37, %s36, 0
  %s39 = smul.u32 2, %s38
  %p40 = scmp.eq.s32.totalorder 0, 0
  // Predicated region
  $region6: #{one_sided.1} parent=0 // pred_check
    %p41 = pneg %p40
  $region7: #{one_sided.1} parent=0 // pred_check_branch
    %43 = sbr.rel (%p41) target = $region9
  $region8: #{one_sided.1} parent=0 // pred_region
    %44 = vst [vmem:[#allocation2] sm:$0xff] 0.0
  $region9: #{one_sided.1} parent=0 // pred_fallthru
    _
  %s45 = sadd.s32 0, 0
  %s46 = smul.u32 %s45, 16
  %s47 = ssub.s32 16, %s46
  %p48 = scmp.ge.s32.totalorder %s47, 16
  // Predicated region
  $region10: #{one_sided.1} parent=0 // pred_check
    %p49 = pneg %p48
  $region11: #{one_sided.1} parent=0 // pred_check_branch
    %51 = sbr.rel (%p49) target = $region13
  $region12: #{one_sided.1} parent=0 // pred_region
    %v52 = vld [vmem:[#allocation2] sm:$0xff]
    %v53 = vld [vmem:[%s35] sm:$0xff]
    %v54 = vld [vmem:[%s35 + $0x8] sm:$0xff]
    %v55 = vmin.f32 %v53, 0.0
    %v56 = vmin.f32 %v54, 0.0
    %v57 = vadd.f32 %v55, %v56
    %v58 = vadd.f32 %v57, 0.0
    %v59 = vadd.f32 %v52, %v58
    %60 = vst [vmem:[#allocation2] sm:$0xff] %v59
  $region13: #{one_sided.1} parent=0 // pred_fallthru
    _
  %p61 = scmp.gt.s32.totalorder %s47, 0
  %p62 = scmp.lt.s32.totalorder %s47, 16
  %p63 = pnand %p61, %p62
  %p64 = pneg %p63
  // Predicated region
  $region14: #{one_sided.1} parent=0 // pred_check
    _
  $region15: #{one_sided.1} parent=0 // pred_check_branch
    %66 = sbr.rel (%p63) target = $region17
  $region16: #{one_sided.1} parent=0 // pred_region
    %v67 = vld [vmem:[#allocation2] sm:$0xff]
    %v68 = vlaneseq
    %v69 = vshrl.u32 %v68, 7
    %v70 = vadd.s32 %v69, 8
    %v71 = vld [vmem:[%s35] sm:$0xff]
    %v72 = vld [vmem:[%s35 + $0x8] sm:$0xff]
    %v73 = vmin.f32 %v71, 0.0
    %v74 = vmin.f32 %v72, 0.0
    %v75 = vstv 0
    %v76 = vadd.s32 %v69, %v75
    %v77 = vadd.s32 %v70, %v75
    %v78 = vstv %s47
    %vm79 = vcmp.lt.s32.totalorder %v76, %v78
    %vm80 = vcmp.lt.s32.totalorder %v77, %v78
    %v81 = vsel %vm79, %v73, 0.0
    %v82 = vsel %vm80, %v74, 0.0
    %v83 = vadd.f32 %v81, %v82
    %v84 = vadd.f32 %v83, 0.0
    %v85 = vadd.f32 %v67, %v84
    %86 = vst [vmem:[#allocation2] sm:$0xff] %v85
  $region17: #{one_sided.1} parent=0 // pred_fallthru
    _
  // Predicated region
  $region18: #{one_sided.1} parent=0 // pred_check
    %p87 = pneg %p40
  $region19: #{one_sided.1} parent=0 // pred_check_branch
    %89 = sbr.rel (%p87) target = $region21
  $region20: #{one_sided.1} parent=0 // pred_region
    %v90 = vld [vmem:[#allocation2] sm:$0xff]
    %91 = vst [vmem:[%s1] sm:$0xff] %v90
  $region21: #{one_sided.1} parent=0 // pred_fallthru
    _
  // Predicated region
  $region22: #{one_sided.1} parent=0 // pred_check
    _
  $region23: #{one_sided.1} parent=0 // pred_check_branch
    %93 = sbr.rel (0) target = $region25
  $region24: #{one_sided.1} parent=0 // pred_region
    _
  $region25: #{one_sided.1} parent=0 // pred_fallthru
    _
  // Predicated region
  $region26: #{one_sided.1} parent=0 // pred_check
    _
  $region27: #{one_sided.1} parent=0 // pred_check_branch
    %95 = sbr.rel (0) target = $region29
  $region28: #{one_sided.1} parent=0 // pred_region
    _
  $region29: #{one_sided.1} parent=0 // pred_fallthru
    _

</llo_original>
